<compile_context>
chip_gen: v6e
topology: v6e:2x2x1
jax: 0.10.0
libtpu: 0.0.40
codegen_flags: <defaults>
</compile_context>

<pallas_src>
import jax
import jax.numpy as jnp
from jax.experimental import pallas as pl
from jax.experimental.pallas import tpu as pltpu


def _conv_chain_kernel(x_ref, w1_ref, b1_ref, w2_ref, b2_ref, o_ref):
    """All refs live in SMEM; ~67 scalar MACs on the scalar unit.

    x_ref : (C_IN,)        input pixel channels
    w1_ref: (C_MID*C_IN,)  conv1 1x1 weights, row-major (out_ch, in_ch)
    b1_ref: (C_MID,)       conv1 bias
    w2_ref: (C_MID,)       conv2 1x1 weights (single output channel)
    b2_ref: (1,)           conv2 bias
    o_ref : (1, 1)         final scalar result
    """
    c_in = x_ref.shape[0]
    c_mid = b1_ref.shape[0]

    y = b2_ref[0]
    for j in range(c_mid):            # trace-time unroll (16 iterations)
        h = b1_ref[j]
        for i in range(c_in):         # trace-time unroll (3 iterations)
            h = h + w1_ref[j * c_in + i] * x_ref[i]
        y = y + w2_ref[j] * h
    o_ref[0, 0] = y


@jax.jit
def model_forward(x_nchw, w1, b1, w2, b2):
    """x_nchw: (1, 3, 1, 1); w1: (16, 3, 1, 1); b1: (16,);
    w2: (1, 16, 1, 1); b2: (1,).  Returns (1, 1, 1, 1) float32."""
    n, c_in, h, w = x_nchw.shape
    assert n * h * w == 1, "module's forward uses a single-pixel input"
    c_mid = w1.shape[0]

    x_flat = x_nchw.reshape(c_in).astype(jnp.float32)          # (3,)
    w1_flat = w1.reshape(c_mid * c_in).astype(jnp.float32)     # (48,)
    b1_flat = b1.reshape(c_mid).astype(jnp.float32)            # (16,)
    w2_flat = w2.reshape(c_mid).astype(jnp.float32)            # (16,)
    b2_flat = b2.reshape(1).astype(jnp.float32)                # (1,)

    smem_spec = pl.BlockSpec(memory_space=pltpu.MemorySpace.SMEM)

    out = pl.pallas_call(
        _conv_chain_kernel,
        out_shape=jax.ShapeDtypeStruct((1, 1), jnp.float32),
        in_specs=[smem_spec] * 5,
        out_specs=smem_spec,
        cost_estimate=pl.CostEstimate(
            flops=2 * (c_mid * c_in + c_mid),                      # ~130 MACs
            bytes_accessed=4 * (c_in + c_mid * c_in + 2 * c_mid + 1 + 1),
            transcendentals=0,
        ),
    )(x_flat, w1_flat, b1_flat, w2_flat, b2_flat)

    return out.reshape(1, 1, 1, 1)


if __name__ == "__main__":
    key = jax.random.PRNGKey(0)
    k_in, k_w1, k_b1, k_w2, k_b2 = jax.random.split(key, 5)

    # Deterministic parameters / input (shapes from the module's __init__,
    # with the 3-channel input conv1 actually requires).
    x = jax.random.normal(k_in, (1, 3, 1, 1), jnp.float32)
    w1 = jax.random.normal(k_w1, (16, 3, 1, 1), jnp.float32) * 0.1
    b1 = jax.random.normal(k_b1, (16,), jnp.float32) * 0.1
    w2 = jax.random.normal(k_w2, (1, 16, 1, 1), jnp.float32) * 0.1
    b2 = jax.random.normal(k_b2, (1,), jnp.float32) * 0.1

    out = model_forward(x, w1, b1, w2, b2)
    jax.block_until_ready(out)

    # Pure-JAX reference of the same (un-folded) 1x1-conv chain.
    ref_h = jnp.einsum("oi,nihw->nohw", w1.reshape(16, 3), x) + b1[None, :, None, None]
    ref_y = jnp.einsum("oi,nihw->nohw", w2.reshape(1, 16), ref_h) + b2[None, :, None, None]

    assert out.shape == (1, 1, 1, 1)
    assert jnp.allclose(out, ref_y, atol=1e-5), (out, ref_y)

    print("KERNEL_OK")
</pallas_src>

<mosaic_0001>
module attributes {stable_mosaic.version = 11 : i64} {
  func.func @_conv_chain_kernel(%arg0: memref<3xf32, #tpu.memory_space<smem>>, %arg1: memref<48xf32, #tpu.memory_space<smem>>, %arg2: memref<16xf32, #tpu.memory_space<smem>>, %arg3: memref<16xf32, #tpu.memory_space<smem>>, %arg4: memref<1xf32, #tpu.memory_space<smem>>, %arg5: memref<1x1xf32, #tpu.memory_space<smem>>) attributes {dimension_semantics = [], scalar_prefetch = 0 : i64, scratch_operands = 0 : i64, tpu.core_type = #tpu.core_type<tc>} {
    %c0 = arith.constant 0 : index
    %0 = memref.load %arg4[%c0] : memref<1xf32, #tpu.memory_space<smem>>
    %c0_0 = arith.constant 0 : index
    %1 = memref.load %arg2[%c0_0] : memref<16xf32, #tpu.memory_space<smem>>
    %c0_1 = arith.constant 0 : index
    %2 = memref.load %arg1[%c0_1] : memref<48xf32, #tpu.memory_space<smem>>
    %c0_2 = arith.constant 0 : index
    %3 = memref.load %arg0[%c0_2] : memref<3xf32, #tpu.memory_space<smem>>
    %4 = arith.mulf %2, %3 : f32
    %5 = arith.addf %1, %4 : f32
    %c1 = arith.constant 1 : index
    %6 = memref.load %arg1[%c1] : memref<48xf32, #tpu.memory_space<smem>>
    %c1_3 = arith.constant 1 : index
    %7 = memref.load %arg0[%c1_3] : memref<3xf32, #tpu.memory_space<smem>>
    %8 = arith.mulf %6, %7 : f32
    %9 = arith.addf %5, %8 : f32
    %c2 = arith.constant 2 : index
    %10 = memref.load %arg1[%c2] : memref<48xf32, #tpu.memory_space<smem>>
    %c2_4 = arith.constant 2 : index
    %11 = memref.load %arg0[%c2_4] : memref<3xf32, #tpu.memory_space<smem>>
    %12 = arith.mulf %10, %11 : f32
    %13 = arith.addf %9, %12 : f32
    %c0_5 = arith.constant 0 : index
    %14 = memref.load %arg3[%c0_5] : memref<16xf32, #tpu.memory_space<smem>>
    %15 = arith.mulf %14, %13 : f32
    %16 = arith.addf %0, %15 : f32
    %c1_6 = arith.constant 1 : index
    %17 = memref.load %arg2[%c1_6] : memref<16xf32, #tpu.memory_space<smem>>
    %c3 = arith.constant 3 : index
    %18 = memref.load %arg1[%c3] : memref<48xf32, #tpu.memory_space<smem>>
    %c0_7 = arith.constant 0 : index
    %19 = memref.load %arg0[%c0_7] : memref<3xf32, #tpu.memory_space<smem>>
    %20 = arith.mulf %18, %19 : f32
    %21 = arith.addf %17, %20 : f32
    %c4 = arith.constant 4 : index
    %22 = memref.load %arg1[%c4] : memref<48xf32, #tpu.memory_space<smem>>
    %c1_8 = arith.constant 1 : index
    %23 = memref.load %arg0[%c1_8] : memref<3xf32, #tpu.memory_space<smem>>
    %24 = arith.mulf %22, %23 : f32
    %25 = arith.addf %21, %24 : f32
    %c5 = arith.constant 5 : index
    %26 = memref.load %arg1[%c5] : memref<48xf32, #tpu.memory_space<smem>>
    %c2_9 = arith.constant 2 : index
    %27 = memref.load %arg0[%c2_9] : memref<3xf32, #tpu.memory_space<smem>>
    %28 = arith.mulf %26, %27 : f32
    %29 = arith.addf %25, %28 : f32
    %c1_10 = arith.constant 1 : index
    %30 = memref.load %arg3[%c1_10] : memref<16xf32, #tpu.memory_space<smem>>
    %31 = arith.mulf %30, %29 : f32
    %32 = arith.addf %16, %31 : f32
    %c2_11 = arith.constant 2 : index
    %33 = memref.load %arg2[%c2_11] : memref<16xf32, #tpu.memory_space<smem>>
    %c6 = arith.constant 6 : index
    %34 = memref.load %arg1[%c6] : memref<48xf32, #tpu.memory_space<smem>>
    %c0_12 = arith.constant 0 : index
    %35 = memref.load %arg0[%c0_12] : memref<3xf32, #tpu.memory_space<smem>>
    %36 = arith.mulf %34, %35 : f32
    %37 = arith.addf %33, %36 : f32
    %c7 = arith.constant 7 : index
    %38 = memref.load %arg1[%c7] : memref<48xf32, #tpu.memory_space<smem>>
    %c1_13 = arith.constant 1 : index
    %39 = memref.load %arg0[%c1_13] : memref<3xf32, #tpu.memory_space<smem>>
    %40 = arith.mulf %38, %39 : f32
    %41 = arith.addf %37, %40 : f32
    %c8 = arith.constant 8 : index
    %42 = memref.load %arg1[%c8] : memref<48xf32, #tpu.memory_space<smem>>
    %c2_14 = arith.constant 2 : index
    %43 = memref.load %arg0[%c2_14] : memref<3xf32, #tpu.memory_space<smem>>
    %44 = arith.mulf %42, %43 : f32
    %45 = arith.addf %41, %44 : f32
    %c2_15 = arith.constant 2 : index
    %46 = memref.load %arg3[%c2_15] : memref<16xf32, #tpu.memory_space<smem>>
    %47 = arith.mulf %46, %45 : f32
    %48 = arith.addf %32, %47 : f32
    %c3_16 = arith.constant 3 : index
    %49 = memref.load %arg2[%c3_16] : memref<16xf32, #tpu.memory_space<smem>>
    %c9 = arith.constant 9 : index
    %50 = memref.load %arg1[%c9] : memref<48xf32, #tpu.memory_space<smem>>
    %c0_17 = arith.constant 0 : index
    %51 = memref.load %arg0[%c0_17] : memref<3xf32, #tpu.memory_space<smem>>
    %52 = arith.mulf %50, %51 : f32
    %53 = arith.addf %49, %52 : f32
    %c10 = arith.constant 10 : index
    %54 = memref.load %arg1[%c10] : memref<48xf32, #tpu.memory_space<smem>>
    %c1_18 = arith.constant 1 : index
    %55 = memref.load %arg0[%c1_18] : memref<3xf32, #tpu.memory_space<smem>>
    %56 = arith.mulf %54, %55 : f32
    %57 = arith.addf %53, %56 : f32
    %c11 = arith.constant 11 : index
    %58 = memref.load %arg1[%c11] : memref<48xf32, #tpu.memory_space<smem>>
    %c2_19 = arith.constant 2 : index
    %59 = memref.load %arg0[%c2_19] : memref<3xf32, #tpu.memory_space<smem>>
    %60 = arith.mulf %58, %59 : f32
    %61 = arith.addf %57, %60 : f32
    %c3_20 = arith.constant 3 : index
    %62 = memref.load %arg3[%c3_20] : memref<16xf32, #tpu.memory_space<smem>>
    %63 = arith.mulf %62, %61 : f32
    %64 = arith.addf %48, %63 : f32
    %c4_21 = arith.constant 4 : index
    %65 = memref.load %arg2[%c4_21] : memref<16xf32, #tpu.memory_space<smem>>
    %c12 = arith.constant 12 : index
    %66 = memref.load %arg1[%c12] : memref<48xf32, #tpu.memory_space<smem>>
    %c0_22 = arith.constant 0 : index
    %67 = memref.load %arg0[%c0_22] : memref<3xf32, #tpu.memory_space<smem>>
    %68 = arith.mulf %66, %67 : f32
    %69 = arith.addf %65, %68 : f32
    %c13 = arith.constant 13 : index
    %70 = memref.load %arg1[%c13] : memref<48xf32, #tpu.memory_space<smem>>
    %c1_23 = arith.constant 1 : index
    %71 = memref.load %arg0[%c1_23] : memref<3xf32, #tpu.memory_space<smem>>
    %72 = arith.mulf %70, %71 : f32
    %73 = arith.addf %69, %72 : f32
    %c14 = arith.constant 14 : index
    %74 = memref.load %arg1[%c14] : memref<48xf32, #tpu.memory_space<smem>>
    %c2_24 = arith.constant 2 : index
    %75 = memref.load %arg0[%c2_24] : memref<3xf32, #tpu.memory_space<smem>>
    %76 = arith.mulf %74, %75 : f32
    %77 = arith.addf %73, %76 : f32
    %c4_25 = arith.constant 4 : index
    %78 = memref.load %arg3[%c4_25] : memref<16xf32, #tpu.memory_space<smem>>
    %79 = arith.mulf %78, %77 : f32
    %80 = arith.addf %64, %79 : f32
    %c5_26 = arith.constant 5 : index
    %81 = memref.load %arg2[%c5_26] : memref<16xf32, #tpu.memory_space<smem>>
    %c15 = arith.constant 15 : index
    %82 = memref.load %arg1[%c15] : memref<48xf32, #tpu.memory_space<smem>>
    %c0_27 = arith.constant 0 : index
    %83 = memref.load %arg0[%c0_27] : memref<3xf32, #tpu.memory_space<smem>>
    %84 = arith.mulf %82, %83 : f32
    %85 = arith.addf %81, %84 : f32
    %c16 = arith.constant 16 : index
    %86 = memref.load %arg1[%c16] : memref<48xf32, #tpu.memory_space<smem>>
    %c1_28 = arith.constant 1 : index
    %87 = memref.load %arg0[%c1_28] : memref<3xf32, #tpu.memory_space<smem>>
    %88 = arith.mulf %86, %87 : f32
    %89 = arith.addf %85, %88 : f32
    %c17 = arith.constant 17 : index
    %90 = memref.load %arg1[%c17] : memref<48xf32, #tpu.memory_space<smem>>
    %c2_29 = arith.constant 2 : index
    %91 = memref.load %arg0[%c2_29] : memref<3xf32, #tpu.memory_space<smem>>
    %92 = arith.mulf %90, %91 : f32
    %93 = arith.addf %89, %92 : f32
    %c5_30 = arith.constant 5 : index
    %94 = memref.load %arg3[%c5_30] : memref<16xf32, #tpu.memory_space<smem>>
    %95 = arith.mulf %94, %93 : f32
    %96 = arith.addf %80, %95 : f32
    %c6_31 = arith.constant 6 : index
    %97 = memref.load %arg2[%c6_31] : memref<16xf32, #tpu.memory_space<smem>>
    %c18 = arith.constant 18 : index
    %98 = memref.load %arg1[%c18] : memref<48xf32, #tpu.memory_space<smem>>
    %c0_32 = arith.constant 0 : index
    %99 = memref.load %arg0[%c0_32] : memref<3xf32, #tpu.memory_space<smem>>
    %100 = arith.mulf %98, %99 : f32
    %101 = arith.addf %97, %100 : f32
    %c19 = arith.constant 19 : index
    %102 = memref.load %arg1[%c19] : memref<48xf32, #tpu.memory_space<smem>>
    %c1_33 = arith.constant 1 : index
    %103 = memref.load %arg0[%c1_33] : memref<3xf32, #tpu.memory_space<smem>>
    %104 = arith.mulf %102, %103 : f32
    %105 = arith.addf %101, %104 : f32
    %c20 = arith.constant 20 : index
    %106 = memref.load %arg1[%c20] : memref<48xf32, #tpu.memory_space<smem>>
    %c2_34 = arith.constant 2 : index
    %107 = memref.load %arg0[%c2_34] : memref<3xf32, #tpu.memory_space<smem>>
    %108 = arith.mulf %106, %107 : f32
    %109 = arith.addf %105, %108 : f32
    %c6_35 = arith.constant 6 : index
    %110 = memref.load %arg3[%c6_35] : memref<16xf32, #tpu.memory_space<smem>>
    %111 = arith.mulf %110, %109 : f32
    %112 = arith.addf %96, %111 : f32
    %c7_36 = arith.constant 7 : index
    %113 = memref.load %arg2[%c7_36] : memref<16xf32, #tpu.memory_space<smem>>
    %c21 = arith.constant 21 : index
    %114 = memref.load %arg1[%c21] : memref<48xf32, #tpu.memory_space<smem>>
    %c0_37 = arith.constant 0 : index
    %115 = memref.load %arg0[%c0_37] : memref<3xf32, #tpu.memory_space<smem>>
    %116 = arith.mulf %114, %115 : f32
    %117 = arith.addf %113, %116 : f32
    %c22 = arith.constant 22 : index
    %118 = memref.load %arg1[%c22] : memref<48xf32, #tpu.memory_space<smem>>
    %c1_38 = arith.constant 1 : index
    %119 = memref.load %arg0[%c1_38] : memref<3xf32, #tpu.memory_space<smem>>
    %120 = arith.mulf %118, %119 : f32
    %121 = arith.addf %117, %120 : f32
    %c23 = arith.constant 23 : index
    %122 = memref.load %arg1[%c23] : memref<48xf32, #tpu.memory_space<smem>>
    %c2_39 = arith.constant 2 : index
    %123 = memref.load %arg0[%c2_39] : memref<3xf32, #tpu.memory_space<smem>>
    %124 = arith.mulf %122, %123 : f32
    %125 = arith.addf %121, %124 : f32
    %c7_40 = arith.constant 7 : index
    %126 = memref.load %arg3[%c7_40] : memref<16xf32, #tpu.memory_space<smem>>
    %127 = arith.mulf %126, %125 : f32
    %128 = arith.addf %112, %127 : f32
    %c8_41 = arith.constant 8 : index
    %129 = memref.load %arg2[%c8_41] : memref<16xf32, #tpu.memory_space<smem>>
    %c24 = arith.constant 24 : index
    %130 = memref.load %arg1[%c24] : memref<48xf32, #tpu.memory_space<smem>>
    %c0_42 = arith.constant 0 : index
    %131 = memref.load %arg0[%c0_42] : memref<3xf32, #tpu.memory_space<smem>>
    %132 = arith.mulf %130, %131 : f32
    %133 = arith.addf %129, %132 : f32
    %c25 = arith.constant 25 : index
    %134 = memref.load %arg1[%c25] : memref<48xf32, #tpu.memory_space<smem>>
    %c1_43 = arith.constant 1 : index
    %135 = memref.load %arg0[%c1_43] : memref<3xf32, #tpu.memory_space<smem>>
    %136 = arith.mulf %134, %135 : f32
    %137 = arith.addf %133, %136 : f32
    %c26 = arith.constant 26 : index
    %138 = memref.load %arg1[%c26] : memref<48xf32, #tpu.memory_space<smem>>
    %c2_44 = arith.constant 2 : index
    %139 = memref.load %arg0[%c2_44] : memref<3xf32, #tpu.memory_space<smem>>
    %140 = arith.mulf %138, %139 : f32
    %141 = arith.addf %137, %140 : f32
    %c8_45 = arith.constant 8 : index
    %142 = memref.load %arg3[%c8_45] : memref<16xf32, #tpu.memory_space<smem>>
    %143 = arith.mulf %142, %141 : f32
    %144 = arith.addf %128, %143 : f32
    %c9_46 = arith.constant 9 : index
    %145 = memref.load %arg2[%c9_46] : memref<16xf32, #tpu.memory_space<smem>>
    %c27 = arith.constant 27 : index
    %146 = memref.load %arg1[%c27] : memref<48xf32, #tpu.memory_space<smem>>
    %c0_47 = arith.constant 0 : index
    %147 = memref.load %arg0[%c0_47] : memref<3xf32, #tpu.memory_space<smem>>
    %148 = arith.mulf %146, %147 : f32
    %149 = arith.addf %145, %148 : f32
    %c28 = arith.constant 28 : index
    %150 = memref.load %arg1[%c28] : memref<48xf32, #tpu.memory_space<smem>>
    %c1_48 = arith.constant 1 : index
    %151 = memref.load %arg0[%c1_48] : memref<3xf32, #tpu.memory_space<smem>>
    %152 = arith.mulf %150, %151 : f32
    %153 = arith.addf %149, %152 : f32
    %c29 = arith.constant 29 : index
    %154 = memref.load %arg1[%c29] : memref<48xf32, #tpu.memory_space<smem>>
    %c2_49 = arith.constant 2 : index
    %155 = memref.load %arg0[%c2_49] : memref<3xf32, #tpu.memory_space<smem>>
    %156 = arith.mulf %154, %155 : f32
    %157 = arith.addf %153, %156 : f32
    %c9_50 = arith.constant 9 : index
    %158 = memref.load %arg3[%c9_50] : memref<16xf32, #tpu.memory_space<smem>>
    %159 = arith.mulf %158, %157 : f32
    %160 = arith.addf %144, %159 : f32
    %c10_51 = arith.constant 10 : index
    %161 = memref.load %arg2[%c10_51] : memref<16xf32, #tpu.memory_space<smem>>
    %c30 = arith.constant 30 : index
    %162 = memref.load %arg1[%c30] : memref<48xf32, #tpu.memory_space<smem>>
    %c0_52 = arith.constant 0 : index
    %163 = memref.load %arg0[%c0_52] : memref<3xf32, #tpu.memory_space<smem>>
    %164 = arith.mulf %162, %163 : f32
    %165 = arith.addf %161, %164 : f32
    %c31 = arith.constant 31 : index
    %166 = memref.load %arg1[%c31] : memref<48xf32, #tpu.memory_space<smem>>
    %c1_53 = arith.constant 1 : index
    %167 = memref.load %arg0[%c1_53] : memref<3xf32, #tpu.memory_space<smem>>
    %168 = arith.mulf %166, %167 : f32
    %169 = arith.addf %165, %168 : f32
    %c32 = arith.constant 32 : index
    %170 = memref.load %arg1[%c32] : memref<48xf32, #tpu.memory_space<smem>>
    %c2_54 = arith.constant 2 : index
    %171 = memref.load %arg0[%c2_54] : memref<3xf32, #tpu.memory_space<smem>>
    %172 = arith.mulf %170, %171 : f32
    %173 = arith.addf %169, %172 : f32
    %c10_55 = arith.constant 10 : index
    %174 = memref.load %arg3[%c10_55] : memref<16xf32, #tpu.memory_space<smem>>
    %175 = arith.mulf %174, %173 : f32
    %176 = arith.addf %160, %175 : f32
    %c11_56 = arith.constant 11 : index
    %177 = memref.load %arg2[%c11_56] : memref<16xf32, #tpu.memory_space<smem>>
    %c33 = arith.constant 33 : index
    %178 = memref.load %arg1[%c33] : memref<48xf32, #tpu.memory_space<smem>>
    %c0_57 = arith.constant 0 : index
    %179 = memref.load %arg0[%c0_57] : memref<3xf32, #tpu.memory_space<smem>>
    %180 = arith.mulf %178, %179 : f32
    %181 = arith.addf %177, %180 : f32
    %c34 = arith.constant 34 : index
    %182 = memref.load %arg1[%c34] : memref<48xf32, #tpu.memory_space<smem>>
    %c1_58 = arith.constant 1 : index
    %183 = memref.load %arg0[%c1_58] : memref<3xf32, #tpu.memory_space<smem>>
    %184 = arith.mulf %182, %183 : f32
    %185 = arith.addf %181, %184 : f32
    %c35 = arith.constant 35 : index
    %186 = memref.load %arg1[%c35] : memref<48xf32, #tpu.memory_space<smem>>
    %c2_59 = arith.constant 2 : index
    %187 = memref.load %arg0[%c2_59] : memref<3xf32, #tpu.memory_space<smem>>
    %188 = arith.mulf %186, %187 : f32
    %189 = arith.addf %185, %188 : f32
    %c11_60 = arith.constant 11 : index
    %190 = memref.load %arg3[%c11_60] : memref<16xf32, #tpu.memory_space<smem>>
    %191 = arith.mulf %190, %189 : f32
    %192 = arith.addf %176, %191 : f32
    %c12_61 = arith.constant 12 : index
    %193 = memref.load %arg2[%c12_61] : memref<16xf32, #tpu.memory_space<smem>>
    %c36 = arith.constant 36 : index
    %194 = memref.load %arg1[%c36] : memref<48xf32, #tpu.memory_space<smem>>
    %c0_62 = arith.constant 0 : index
    %195 = memref.load %arg0[%c0_62] : memref<3xf32, #tpu.memory_space<smem>>
    %196 = arith.mulf %194, %195 : f32
    %197 = arith.addf %193, %196 : f32
    %c37 = arith.constant 37 : index
    %198 = memref.load %arg1[%c37] : memref<48xf32, #tpu.memory_space<smem>>
    %c1_63 = arith.constant 1 : index
    %199 = memref.load %arg0[%c1_63] : memref<3xf32, #tpu.memory_space<smem>>
    %200 = arith.mulf %198, %199 : f32
    %201 = arith.addf %197, %200 : f32
    %c38 = arith.constant 38 : index
    %202 = memref.load %arg1[%c38] : memref<48xf32, #tpu.memory_space<smem>>
    %c2_64 = arith.constant 2 : index
    %203 = memref.load %arg0[%c2_64] : memref<3xf32, #tpu.memory_space<smem>>
    %204 = arith.mulf %202, %203 : f32
    %205 = arith.addf %201, %204 : f32
    %c12_65 = arith.constant 12 : index
    %206 = memref.load %arg3[%c12_65] : memref<16xf32, #tpu.memory_space<smem>>
    %207 = arith.mulf %206, %205 : f32
    %208 = arith.addf %192, %207 : f32
    %c13_66 = arith.constant 13 : index
    %209 = memref.load %arg2[%c13_66] : memref<16xf32, #tpu.memory_space<smem>>
    %c39 = arith.constant 39 : index
    %210 = memref.load %arg1[%c39] : memref<48xf32, #tpu.memory_space<smem>>
    %c0_67 = arith.constant 0 : index
    %211 = memref.load %arg0[%c0_67] : memref<3xf32, #tpu.memory_space<smem>>
    %212 = arith.mulf %210, %211 : f32
    %213 = arith.addf %209, %212 : f32
    %c40 = arith.constant 40 : index
    %214 = memref.load %arg1[%c40] : memref<48xf32, #tpu.memory_space<smem>>
    %c1_68 = arith.constant 1 : index
    %215 = memref.load %arg0[%c1_68] : memref<3xf32, #tpu.memory_space<smem>>
    %216 = arith.mulf %214, %215 : f32
    %217 = arith.addf %213, %216 : f32
    %c41 = arith.constant 41 : index
    %218 = memref.load %arg1[%c41] : memref<48xf32, #tpu.memory_space<smem>>
    %c2_69 = arith.constant 2 : index
    %219 = memref.load %arg0[%c2_69] : memref<3xf32, #tpu.memory_space<smem>>
    %220 = arith.mulf %218, %219 : f32
    %221 = arith.addf %217, %220 : f32
    %c13_70 = arith.constant 13 : index
    %222 = memref.load %arg3[%c13_70] : memref<16xf32, #tpu.memory_space<smem>>
    %223 = arith.mulf %222, %221 : f32
    %224 = arith.addf %208, %223 : f32
    %c14_71 = arith.constant 14 : index
    %225 = memref.load %arg2[%c14_71] : memref<16xf32, #tpu.memory_space<smem>>
    %c42 = arith.constant 42 : index
    %226 = memref.load %arg1[%c42] : memref<48xf32, #tpu.memory_space<smem>>
    %c0_72 = arith.constant 0 : index
    %227 = memref.load %arg0[%c0_72] : memref<3xf32, #tpu.memory_space<smem>>
    %228 = arith.mulf %226, %227 : f32
    %229 = arith.addf %225, %228 : f32
    %c43 = arith.constant 43 : index
    %230 = memref.load %arg1[%c43] : memref<48xf32, #tpu.memory_space<smem>>
    %c1_73 = arith.constant 1 : index
    %231 = memref.load %arg0[%c1_73] : memref<3xf32, #tpu.memory_space<smem>>
    %232 = arith.mulf %230, %231 : f32
    %233 = arith.addf %229, %232 : f32
    %c44 = arith.constant 44 : index
    %234 = memref.load %arg1[%c44] : memref<48xf32, #tpu.memory_space<smem>>
    %c2_74 = arith.constant 2 : index
    %235 = memref.load %arg0[%c2_74] : memref<3xf32, #tpu.memory_space<smem>>
    %236 = arith.mulf %234, %235 : f32
    %237 = arith.addf %233, %236 : f32
    %c14_75 = arith.constant 14 : index
    %238 = memref.load %arg3[%c14_75] : memref<16xf32, #tpu.memory_space<smem>>
    %239 = arith.mulf %238, %237 : f32
    %240 = arith.addf %224, %239 : f32
    %c15_76 = arith.constant 15 : index
    %241 = memref.load %arg2[%c15_76] : memref<16xf32, #tpu.memory_space<smem>>
    %c45 = arith.constant 45 : index
    %242 = memref.load %arg1[%c45] : memref<48xf32, #tpu.memory_space<smem>>
    %c0_77 = arith.constant 0 : index
    %243 = memref.load %arg0[%c0_77] : memref<3xf32, #tpu.memory_space<smem>>
    %244 = arith.mulf %242, %243 : f32
    %245 = arith.addf %241, %244 : f32
    %c46 = arith.constant 46 : index
    %246 = memref.load %arg1[%c46] : memref<48xf32, #tpu.memory_space<smem>>
    %c1_78 = arith.constant 1 : index
    %247 = memref.load %arg0[%c1_78] : memref<3xf32, #tpu.memory_space<smem>>
    %248 = arith.mulf %246, %247 : f32
    %249 = arith.addf %245, %248 : f32
    %c47 = arith.constant 47 : index
    %250 = memref.load %arg1[%c47] : memref<48xf32, #tpu.memory_space<smem>>
    %c2_79 = arith.constant 2 : index
    %251 = memref.load %arg0[%c2_79] : memref<3xf32, #tpu.memory_space<smem>>
    %252 = arith.mulf %250, %251 : f32
    %253 = arith.addf %249, %252 : f32
    %c15_80 = arith.constant 15 : index
    %254 = memref.load %arg3[%c15_80] : memref<16xf32, #tpu.memory_space<smem>>
    %255 = arith.mulf %254, %253 : f32
    %256 = arith.addf %240, %255 : f32
    %c0_81 = arith.constant 0 : index
    %c0_82 = arith.constant 0 : index
    %257 = memref.load %arg5[%c0_81, %c0_82] : memref<1x1xf32, #tpu.memory_space<smem>>
    memref.store %256, %arg5[%c0_81, %c0_82] : memref<1x1xf32, #tpu.memory_space<smem>>
    return
  }
}

</mosaic_0001>

<llo_original>
// kernel: model_forward.1
$region0: #{model_forward.1}
  #allocation0 [shape = 'u32[]', space=smem, size = 0x4, offset = 0x4, fixed_abs, tag = 'smem constant byte address 0x4 - core index']
  #allocation1 [shape = 'u32[144,128]{1,0:T(1,128)}', space=vmem, size = 0x12000, scoped, tag = 'internal scratch']
  #allocation2 [shape = 'f32[1]{0:T(128)S(6)}', space=smem, size = 0x200, scoped, tag = 'scoped memory for model_forward.1']
  %s0 = inlined_call_operand.vmem [shape: f32[3], index: 0, kind: input, shape index: {}]
  %s1 = inlined_call_operand.vmem [shape: f32[48], index: 1, kind: input, shape index: {}]
  %s2 = inlined_call_operand.vmem [shape: f32[16], index: 2, kind: input, shape index: {}]
  %s3 = inlined_call_operand.vmem [shape: f32[16], index: 3, kind: input, shape index: {}]
  %s4 = inlined_call_operand.<no memory space> [shape: f32[1], index: 4, kind: input, shape index: {}]
  %s5 = inlined_call_operand.hbm [shape: f32[1,1], index: 5, kind: output, shape index: {}]
  %s6 = sld [smem:[#allocation0]]
  $region46: #{model_forward.1} parent=0
    _
  %s8 = ssub.s32 1, %s6
  %s9 = scalar_select 0, %s8, %s6
  %10 = sst [smem:[#allocation2]] %s4
  $region1: #{model_forward.1} parent=0
    #allocation3 [shape = 'u8[512]{0}', space=smem, size = 0x200, scoped, tag = 'input window, operand 0, single buffered']
    #allocation4 [shape = 's32[1]{0}', space=sflag, size = 0x4, scoped, tag = 'scoped memory for model_forward.1']
    #allocation5 [shape = 's32[1]{0}', space=sflag, size = 0x4, scoped, tag = 'scoped memory for model_forward.1']
    #allocation6 [shape = 'u8[512]{0}', space=smem, size = 0x200, scoped, tag = 'input window, operand 1, single buffered']
    #allocation7 [shape = 's32[1]{0}', space=sflag, size = 0x4, scoped, tag = 'scoped memory for model_forward.1']
    #allocation8 [shape = 'u8[512]{0}', space=smem, size = 0x200, scoped, tag = 'input window, operand 2, single buffered']
    #allocation9 [shape = 'u8[512]{0}', space=smem, size = 0x200, scoped, tag = 'input window, operand 3, single buffered']
    #allocation10 [shape = 's32[1]{0}', space=sflag, size = 0x4, scoped, tag = 'scoped memory for model_forward.1']
    #allocation11 [shape = 'u8[512]{0}', space=smem, size = 0x200, scoped, tag = 'output window, operand 0, single buffered']
    %11 = vsyncpa [#allocation5], 0
    %12 = vsyncpa [#allocation7], 0
    %13 = vsyncpa [#allocation10], 0
    %14 = vsyncpa [#allocation4], 0
    // Predicated region
    $region2: #{model_forward.1} parent=1 // pred_check
      _
    $region3: #{model_forward.1} parent=1 // pred_check_branch
      %16 = sbr.rel (0) target = $region5
    $region4: #{model_forward.1} parent=1 // pred_region
      %s18 = ssub.s32 16, 16
      %19 = vsyncadd [#allocation5], %s18
      %s21 = sshll.u32 %s0, 4
      %s22 = int_to_ptr.vmem [resolvable:$true] %s21
      %24 = dma.vmem_to_smem %s22, 16, [#allocation3], [#allocation5]
    $region5: #{model_forward.1} parent=1 // pred_fallthru
      _
    // Predicated region
    $region6: #{model_forward.1} parent=1 // pred_check
      _
    $region7: #{model_forward.1} parent=1 // pred_check_branch
      %26 = sbr.rel (0) target = $region9
    $region8: #{model_forward.1} parent=1 // pred_region
      %s28 = ssub.s32 16, 16
      %29 = vsyncadd [#allocation7], %s28
      %s31 = sshll.u32 %s1, 4
      %s32 = int_to_ptr.vmem [resolvable:$true] %s31
      %34 = dma.vmem_to_smem %s32, 16, [#allocation6], [#allocation7]
    $region9: #{model_forward.1} parent=1 // pred_fallthru
      _
    // Predicated region
    $region10: #{model_forward.1} parent=1 // pred_check
      _
    $region11: #{model_forward.1} parent=1 // pred_check_branch
      %36 = sbr.rel (0) target = $region13
    $region12: #{model_forward.1} parent=1 // pred_region
      %s38 = ssub.s32 16, 16
      %39 = vsyncadd [#allocation7], %s38
      %s41 = sshll.u32 %s2, 4
      %s42 = int_to_ptr.vmem [resolvable:$true] %s41
      %44 = dma.vmem_to_smem %s42, 16, [#allocation8], [#allocation7]
    $region13: #{model_forward.1} parent=1 // pred_fallthru
      _
    // Predicated region
    $region14: #{model_forward.1} parent=1 // pred_check
      _
    $region15: #{model_forward.1} parent=1 // pred_check_branch
      %46 = sbr.rel (0) target = $region17
    $region16: #{model_forward.1} parent=1 // pred_region
      %s48 = ssub.s32 16, 16
      %49 = vsyncadd [#allocation10], %s48
      %s51 = sshll.u32 %s3, 4
      %s52 = int_to_ptr.vmem [resolvable:$true] %s51
      %54 = dma.vmem_to_smem %s52, 16, [#allocation9], [#allocation10]
    $region17: #{model_forward.1} parent=1 // pred_fallthru
      _
    // Predicated region
    $region18: #{model_forward.1} parent=1 // pred_check
      _
    $region19: #{model_forward.1} parent=1 // pred_check_branch
      %56 = sbr.rel (0) target = $region21
    $region20: #{model_forward.1} parent=1 // pred_region
      _
    $region21: #{model_forward.1} parent=1 // pred_fallthru
      _
    // Predicated region
    $region22: #{model_forward.1} parent=1 // pred_check
      _
    $region23: #{model_forward.1} parent=1 // pred_check_branch
      %58 = sbr.rel (0) target = $region25
    $region24: #{model_forward.1} parent=1 // pred_region
      %59 = dma.done [#allocation5], 16
    $region25: #{model_forward.1} parent=1 // pred_fallthru
      _
    // Predicated region
    $region26: #{model_forward.1} parent=1 // pred_check
      _
    $region27: #{model_forward.1} parent=1 // pred_check_branch
      %61 = sbr.rel (0) target = $region29
    $region28: #{model_forward.1} parent=1 // pred_region
      %62 = dma.done [#allocation7], 16
    $region29: #{model_forward.1} parent=1 // pred_fallthru
      _
    // Predicated region
    $region30: #{model_forward.1} parent=1 // pred_check
      _
    $region31: #{model_forward.1} parent=1 // pred_check_branch
      %64 = sbr.rel (0) target = $region33
    $region32: #{model_forward.1} parent=1 // pred_region
      %65 = dma.done [#allocation7], 16
    $region33: #{model_forward.1} parent=1 // pred_fallthru
      _
    // Predicated region
    $region34: #{model_forward.1} parent=1 // pred_check
      _
    $region35: #{model_forward.1} parent=1 // pred_check_branch
      %67 = sbr.rel (0) target = $region37
    $region36: #{model_forward.1} parent=1 // pred_region
      %68 = dma.done [#allocation10], 16
    $region37: #{model_forward.1} parent=1 // pred_fallthru
      _
    %69 = sfence
    %s70 = sld [smem:[#allocation2]]
    %s71 = sld [smem:[#allocation8]]
    %s72 = sld [smem:[#allocation6]]
    %s73 = sld [smem:[#allocation3]]
    %s74 = smul.f32 %s72, %s73
    %s75 = sadd.f32 %s71, %s74
    %s76 = sld [smem:[#allocation6 + $0x1]]
    %s77 = sld [smem:[#allocation3 + $0x1]]
    %s78 = smul.f32 %s76, %s77
    %s79 = sadd.f32 %s75, %s78
    %s80 = sld [smem:[#allocation6 + $0x2]]
    %s81 = sld [smem:[#allocation3 + $0x2]]
    %s82 = smul.f32 %s80, %s81
    %s83 = sadd.f32 %s79, %s82
    %s84 = sld [smem:[#allocation9]]
    %s85 = smul.f32 %s84, %s83
    %s86 = sadd.f32 %s70, %s85
    %s87 = sld [smem:[#allocation8 + $0x1]]
    %s88 = sld [smem:[#allocation6 + $0x3]]
    %s89 = smul.f32 %s88, %s73
    %s90 = sadd.f32 %s87, %s89
    %s91 = sld [smem:[#allocation6 + $0x4]]
    %s92 = smul.f32 %s91, %s77
    %s93 = sadd.f32 %s90, %s92
    %s94 = sld [smem:[#allocation6 + $0x5]]
    %s95 = smul.f32 %s94, %s81
    %s96 = sadd.f32 %s93, %s95
    %s97 = sld [smem:[#allocation9 + $0x1]]
    %s98 = smul.f32 %s97, %s96
    %s99 = sadd.f32 %s86, %s98
    %s100 = sld [smem:[#allocation8 + $0x2]]
    %s101 = sld [smem:[#allocation6 + $0x6]]
    %s102 = smul.f32 %s101, %s73
    %s103 = sadd.f32 %s100, %s102
    %s104 = sld [smem:[#allocation6 + $0x7]]
    %s105 = smul.f32 %s104, %s77
    %s106 = sadd.f32 %s103, %s105
    %s107 = sld [smem:[#allocation6 + $0x8]]
    %s108 = smul.f32 %s107, %s81
    %s109 = sadd.f32 %s106, %s108
    %s110 = sld [smem:[#allocation9 + $0x2]]
    %s111 = smul.f32 %s110, %s109
    %s112 = sadd.f32 %s99, %s111
    %s113 = sld [smem:[#allocation8 + $0x3]]
    %s114 = sld [smem:[#allocation6 + $0x9]]
    %s115 = smul.f32 %s114, %s73
    %s116 = sadd.f32 %s113, %s115
    %s117 = sld [smem:[#allocation6 + $0xa]]
    %s118 = smul.f32 %s117, %s77
    %s119 = sadd.f32 %s116, %s118
    %s120 = sld [smem:[#allocation6 + $0xb]]
    %s121 = smul.f32 %s120, %s81
    %s122 = sadd.f32 %s119, %s121
    %s123 = sld [smem:[#allocation9 + $0x3]]
    %s124 = smul.f32 %s123, %s122
    %s125 = sadd.f32 %s112, %s124
    %s126 = sld [smem:[#allocation8 + $0x4]]
    %s127 = sld [smem:[#allocation6 + $0xc]]
    %s128 = smul.f32 %s127, %s73
    %s129 = sadd.f32 %s126, %s128
    %s130 = sld [smem:[#allocation6 + $0xd]]
    %s131 = smul.f32 %s130, %s77
    %s132 = sadd.f32 %s129, %s131
    %s133 = sld [smem:[#allocation6 + $0xe]]
    %s134 = smul.f32 %s133, %s81
    %s135 = sadd.f32 %s132, %s134
    %s136 = sld [smem:[#allocation9 + $0x4]]
    %s137 = smul.f32 %s136, %s135
    %s138 = sadd.f32 %s125, %s137
    %s139 = sld [smem:[#allocation8 + $0x5]]
    %s140 = sld [smem:[#allocation6 + $0xf]]
    %s141 = smul.f32 %s140, %s73
    %s142 = sadd.f32 %s139, %s141
    %s143 = sld [smem:[#allocation6 + $0x10]]
    %s144 = smul.f32 %s143, %s77
    %s145 = sadd.f32 %s142, %s144
    %s146 = sld [smem:[#allocation6 + $0x11]]
    %s147 = smul.f32 %s146, %s81
    %s148 = sadd.f32 %s145, %s147
    %s149 = sld [smem:[#allocation9 + $0x5]]
    %s150 = smul.f32 %s149, %s148
    %s151 = sadd.f32 %s138, %s150
    %s152 = sld [smem:[#allocation8 + $0x6]]
    %s153 = sld [smem:[#allocation6 + $0x12]]
    %s154 = smul.f32 %s153, %s73
    %s155 = sadd.f32 %s152, %s154
    %s156 = sld [smem:[#allocation6 + $0x13]]
    %s157 = smul.f32 %s156, %s77
    %s158 = sadd.f32 %s155, %s157
    %s159 = sld [smem:[#allocation6 + $0x14]]
    %s160 = smul.f32 %s159, %s81
    %s161 = sadd.f32 %s158, %s160
    %s162 = sld [smem:[#allocation9 + $0x6]]
    %s163 = smul.f32 %s162, %s161
    %s164 = sadd.f32 %s151, %s163
    %s165 = sld [smem:[#allocation8 + $0x7]]
    %s166 = sld [smem:[#allocation6 + $0x15]]
    %s167 = smul.f32 %s166, %s73
    %s168 = sadd.f32 %s165, %s167
    %s169 = sld [smem:[#allocation6 + $0x16]]
    %s170 = smul.f32 %s169, %s77
    %s171 = sadd.f32 %s168, %s170
    %s172 = sld [smem:[#allocation6 + $0x17]]
    %s173 = smul.f32 %s172, %s81
    %s174 = sadd.f32 %s171, %s173
    %s175 = sld [smem:[#allocation9 + $0x7]]
    %s176 = smul.f32 %s175, %s174
    %s177 = sadd.f32 %s164, %s176
    %s178 = sld [smem:[#allocation8 + $0x8]]
    %s179 = sld [smem:[#allocation6 + $0x18]]
    %s180 = smul.f32 %s179, %s73
    %s181 = sadd.f32 %s178, %s180
    %s182 = sld [smem:[#allocation6 + $0x19]]
    %s183 = smul.f32 %s182, %s77
    %s184 = sadd.f32 %s181, %s183
    %s185 = sld [smem:[#allocation6 + $0x1a]]
    %s186 = smul.f32 %s185, %s81
    %s187 = sadd.f32 %s184, %s186
    %s188 = sld [smem:[#allocation9 + $0x8]]
    %s189 = smul.f32 %s188, %s187
    %s190 = sadd.f32 %s177, %s189
    %s191 = sld [smem:[#allocation8 + $0x9]]
    %s192 = sld [smem:[#allocation6 + $0x1b]]
    %s193 = smul.f32 %s192, %s73
    %s194 = sadd.f32 %s191, %s193
    %s195 = sld [smem:[#allocation6 + $0x1c]]
    %s196 = smul.f32 %s195, %s77
    %s197 = sadd.f32 %s194, %s196
    %s198 = sld [smem:[#allocation6 + $0x1d]]
    %s199 = smul.f32 %s198, %s81
    %s200 = sadd.f32 %s197, %s199
    %s201 = sld [smem:[#allocation9 + $0x9]]
    %s202 = smul.f32 %s201, %s200
    %s203 = sadd.f32 %s190, %s202
    %s204 = sld [smem:[#allocation8 + $0xa]]
    %s205 = sld [smem:[#allocation6 + $0x1e]]
    %s206 = smul.f32 %s205, %s73
    %s207 = sadd.f32 %s204, %s206
    %s208 = sld [smem:[#allocation6 + $0x1f]]
    %s209 = smul.f32 %s208, %s77
    %s210 = sadd.f32 %s207, %s209
    %s211 = sld [smem:[#allocation6 + $0x20]]
    %s212 = smul.f32 %s211, %s81
    %s213 = sadd.f32 %s210, %s212
    %s214 = sld [smem:[#allocation9 + $0xa]]
    %s215 = smul.f32 %s214, %s213
    %s216 = sadd.f32 %s203, %s215
    %s217 = sld [smem:[#allocation8 + $0xb]]
    %s218 = sld [smem:[#allocation6 + $0x21]]
    %s219 = smul.f32 %s218, %s73
    %s220 = sadd.f32 %s217, %s219
    %s221 = sld [smem:[#allocation6 + $0x22]]
    %s222 = smul.f32 %s221, %s77
    %s223 = sadd.f32 %s220, %s222
    %s224 = sld [smem:[#allocation6 + $0x23]]
    %s225 = smul.f32 %s224, %s81
    %s226 = sadd.f32 %s223, %s225
    %s227 = sld [smem:[#allocation9 + $0xb]]
    %s228 = smul.f32 %s227, %s226
    %s229 = sadd.f32 %s216, %s228
    %s230 = sld [smem:[#allocation8 + $0xc]]
    %s231 = sld [smem:[#allocation6 + $0x24]]
    %s232 = smul.f32 %s231, %s73
    %s233 = sadd.f32 %s230, %s232
    %s234 = sld [smem:[#allocation6 + $0x25]]
    %s235 = smul.f32 %s234, %s77
    %s236 = sadd.f32 %s233, %s235
    %s237 = sld [smem:[#allocation6 + $0x26]]
    %s238 = smul.f32 %s237, %s81
    %s239 = sadd.f32 %s236, %s238
    %s240 = sld [smem:[#allocation9 + $0xc]]
    %s241 = smul.f32 %s240, %s239
    %s242 = sadd.f32 %s229, %s241
    %s243 = sld [smem:[#allocation8 + $0xd]]
    %s244 = sld [smem:[#allocation6 + $0x27]]
    %s245 = smul.f32 %s244, %s73
    %s246 = sadd.f32 %s243, %s245
    %s247 = sld [smem:[#allocation6 + $0x28]]
    %s248 = smul.f32 %s247, %s77
    %s249 = sadd.f32 %s246, %s248
    %s250 = sld [smem:[#allocation6 + $0x29]]
    %s251 = smul.f32 %s250, %s81
    %s252 = sadd.f32 %s249, %s251
    %s253 = sld [smem:[#allocation9 + $0xd]]
    %s254 = smul.f32 %s253, %s252
    %s255 = sadd.f32 %s242, %s254
    %s256 = sld [smem:[#allocation8 + $0xe]]
    %s257 = sld [smem:[#allocation6 + $0x2a]]
    %s258 = smul.f32 %s257, %s73
    %s259 = sadd.f32 %s256, %s258
    %s260 = sld [smem:[#allocation6 + $0x2b]]
    %s261 = smul.f32 %s260, %s77
    %s262 = sadd.f32 %s259, %s261
    %s263 = sld [smem:[#allocation6 + $0x2c]]
    %s264 = smul.f32 %s263, %s81
    %s265 = sadd.f32 %s262, %s264
    %s266 = sld [smem:[#allocation9 + $0xe]]
    %s267 = smul.f32 %s266, %s265
    %s268 = sadd.f32 %s255, %s267
    %s269 = sld [smem:[#allocation8 + $0xf]]
    %s270 = sld [smem:[#allocation6 + $0x2d]]
    %s271 = smul.f32 %s270, %s73
    %s272 = sadd.f32 %s269, %s271
    %s273 = sld [smem:[#allocation6 + $0x2e]]
    %s274 = smul.f32 %s273, %s77
    %s275 = sadd.f32 %s272, %s274
    %s276 = sld [smem:[#allocation6 + $0x2f]]
    %s277 = smul.f32 %s276, %s81
    %s278 = sadd.f32 %s275, %s277
    %s279 = sld [smem:[#allocation9 + $0xf]]
    %s280 = smul.f32 %s279, %s278
    %s281 = sadd.f32 %s268, %s280
    %s282 = scalar_lea.smem [#allocation11], 0
    %283 = sst [smem:[%s282]] %s281
    // Predicated region
    $region38: #{model_forward.1} parent=1 // pred_check
      _
    $region39: #{model_forward.1} parent=1 // pred_check_branch
      %285 = sbr.rel (0) target = $region41
    $region40: #{model_forward.1} parent=1 // pred_region
      %s287 = ssub.s32 16, 16
      %288 = vsyncadd [#allocation4], %s287
      %291 = dma.smem_to_hbm [#allocation11], 16, %s5, [#allocation4]
    $region41: #{model_forward.1} parent=1 // pred_fallthru
      _
    // Predicated region
    $region42: #{model_forward.1} parent=1 // pred_check
      _
    $region43: #{model_forward.1} parent=1 // pred_check_branch
      %293 = sbr.rel (0) target = $region45
    $region44: #{model_forward.1} parent=1 // pred_region
      %294 = dma.done [#allocation4], 16
    $region45: #{model_forward.1} parent=1 // pred_fallthru
      _
    %295 = sfence
    %296 = vsyncpa [#allocation4], 1
    %297 = vsyncpa [#allocation5], 1
    %298 = vsyncpa [#allocation7], 1
    %299 = vsyncpa [#allocation10], 1

</llo_original>
